<compile_context>
chip_gen: v7x
topology: tpu7x:2x2x1
jax: 0.10.0
libtpu: 0.0.40
codegen_flags: <defaults>
</compile_context>

<pallas_src>
import functools

import jax
import jax.numpy as jnp
from jax.experimental import pallas as pl
from jax.experimental.pallas import tpu as pltpu


def fire_kernel(x_ref, wsq_ref, bsq_ref, wcomb_ref, out_ref, *, H, W):
    # x_ref:     (Bt, Cin, H*W)     Bt batch elements, channels on sublanes
    # wsq_ref:   (Csq, Cin)         squeeze 1x1 weight (O, I)
    # bsq_ref:   (Csq, 1)           squeeze bias (f32)
    # wcomb_ref: (Cout, 9*Csq + 1)  fused expand weight: tap-major column
    #                               blocks + trailing bias column
    # out_ref:   (Bt, Cout, H*W)
    Bt = x_ref.shape[0]
    HW = H * W
    L = Bt * HW

    # ---- gather the Bt images along the lane axis (tile-aligned, cheap) ----
    if Bt == 1:
        xw = x_ref[0]                                        # (Cin, HW)
    else:
        xw = jnp.concatenate([x_ref[b] for b in range(Bt)], axis=-1)  # (Cin, L)

    # ---- squeeze: 1x1 conv + bias + ReLU as a single matmul ----------------
    s = jnp.dot(wsq_ref[...], xw, preferred_element_type=jnp.float32)
    s = jnp.maximum(s + bsq_ref[...], 0.0)                   # (Csq, L), f32

    # ---- border masks, generated in-kernel (no HBM mask tensor) ------------
    lane = jax.lax.broadcasted_iota(jnp.int32, (1, L), 1)
    pos = lane % HW                     # flat position within the image
    col = lane % W                      # column within the row
    ok_up = pos >= W                    # row-1 exists   (dy = -1)
    ok_dn = pos < HW - W                # row+1 exists   (dy = +1)
    ok_lf = col >= 1                    # col-1 exists   (dx = -1)
    ok_rt = col <= W - 2                # col+1 exists   (dx = +1)

    # ---- (9*Csq + 1, L) im2col of the squeeze map via XLU lane rolls -------
    # tap (ky,kx): value at flat lane p is s_flat[p + dy*W + dx], zeroed
    # outside the image.  The mask also zeroes the cross-image positions the
    # batch folding introduces (|dy*W + dx| <= W+1 < HW).
    taps = []
    for ky in range(3):
        for kx in range(3):
            dy, dx = ky - 1, kx - 1
            if dy == 0 and dx == 0:
                taps.append(s)                               # centre tap
                continue
            shifted = pltpu.roll(s, shift=(-(dy * W + dx)) % L, axis=1)
            conds = []
            if dy < 0:
                conds.append(ok_up)
            if dy > 0:
                conds.append(ok_dn)
            if dx < 0:
                conds.append(ok_lf)
            if dx > 0:
                conds.append(ok_rt)
            valid = conds[0]
            for c in conds[1:]:
                valid = jnp.logical_and(valid, c)
            taps.append(jnp.where(valid, shifted, 0.0))      # (Csq, L)
    taps.append(jnp.ones((1, L), jnp.float32))               # bias row
    im2col = jnp.concatenate(taps, axis=0)                   # (9*Csq + 1, L)

    # ---- fused expand1x1 + expand3x3 + biases (+ free channel concat) ------
    acc = jnp.dot(wcomb_ref[...], im2col.astype(wcomb_ref.dtype),
                  preferred_element_type=jnp.float32)        # (Cout, L), f32
    res = jnp.maximum(acc, 0.0).astype(out_ref.dtype)

    # ---- scatter the Bt images back to their batch slots -------------------
    if Bt == 1:
        out_ref[0] = res
    else:
        for b in range(Bt):
            out_ref[b] = res[:, b * HW:(b + 1) * HW]


def pack_fire_params(w_sq_oihw, b_sq, w_e1_oihw, b_e1, w_e3_oihw, b_e3,
                     *, dtype=jnp.float32):
    """PyTorch OIHW conv params -> kernel-layout params (packed ONCE).

    `dtype` is the MXU feed dtype for the weights (f32 or bf16; bf16 is valid
    on v5e, v6e and v7x — accumulation and VPU math stay f32 in the kernel).
    """
    Csq = w_sq_oihw.shape[0]
    C1 = w_e1_oihw.shape[0]
    C3 = w_e3_oihw.shape[0]

    wsq = w_sq_oihw[:, :, 0, 0]                                    # (Csq, Cin)

    # Combined expand weight (C1+C3, 9*Csq + 1); column block k = tap ky*3+kx,
    # trailing column = bias (contracted against the im2col ones row).
    top = jnp.zeros((C1, 9 * Csq), jnp.float32)
    top = top.at[:, 4 * Csq:5 * Csq].set(w_e1_oihw[:, :, 0, 0])    # centre tap
    bottom = jnp.transpose(w_e3_oihw, (0, 2, 3, 1)).reshape(C3, 9 * Csq)
    wtaps = jnp.concatenate([top, bottom], axis=0)                 # (Cout, 72)
    bcat = jnp.concatenate([b_e1, b_e3]).reshape(C1 + C3, 1)
    wcomb = jnp.concatenate([wtaps, bcat], axis=1)                 # (Cout, 73)

    bsq = b_sq.reshape(Csq, 1).astype(jnp.float32)                 # stays f32
    return wsq.astype(dtype), bsq, wcomb.astype(dtype)


def _pick_batch_block(N, HW, *, max_lanes=4096):
    """Largest Bt dividing N with Bt*HW <= max_lanes, while keeping >= 2 grid
    steps whenever N >= 2 (so both v7x TensorCores get a step)."""
    best = 1
    for bt in range(1, N + 1):
        if N % bt:
            continue
        if bt > 1 and bt * HW > max_lanes:
            continue
        if N >= 2 and (N // bt) < 2:
            continue
        best = bt
    return best


def fire_forward(x_nchw, params, *, out_dtype=jnp.float32, batch_block=None):
    """x_nchw: (N, Cin, H, W) -> (N, C1+C3, H, W) in `out_dtype`.

    Matmul feed dtype is taken from the packed weights (pack_fire_params
    dtype=...); bf16 halves input/weight DMA on v5e/v6e/v7x while all
    accumulation and VPU math stay f32.  Use out_dtype=jnp.bfloat16 if the
    consumer is bf16 to also halve the output writeback.
    """
    wsq, bsq, wcomb = params
    N, Cin, H, W = x_nchw.shape
    Csq = wsq.shape[0]
    Cout = wcomb.shape[0]
    HW = H * W

    if batch_block is None:
        batch_block = _pick_batch_block(N, HW)
    assert N % batch_block == 0, (N, batch_block)
    G = N // batch_block

    matmul_dtype = wsq.dtype
    # Free reshape (no transpose): NCHW -> (N, Cin, H*W), spatial on lanes.
    x = x_nchw.reshape(N, Cin, HW).astype(matmul_dtype)

    kernel = functools.partial(fire_kernel, H=H, W=W)

    in_item = jnp.dtype(matmul_dtype).itemsize
    out_item = jnp.dtype(out_dtype).itemsize
    cost = pl.CostEstimate(
        flops=2 * N * HW * (Csq * Cin + Cout * (9 * Csq + 1)),
        transcendentals=0,
        bytes_accessed=(x.size * in_item + wsq.size * in_item
                        + wcomb.size * in_item + bsq.size * 4
                        + N * Cout * HW * out_item))

    out = pl.pallas_call(
        kernel,
        out_shape=jax.ShapeDtypeStruct((N, Cout, HW), out_dtype),
        grid_spec=pltpu.PrefetchScalarGridSpec(
            num_scalar_prefetch=0,
            grid=(G,),
            in_specs=[
                pl.BlockSpec((batch_block, Cin, HW), lambda g: (g, 0, 0)),
                # weights / bias: constant block index -> DMA'd only once
                pl.BlockSpec(wsq.shape, lambda g: (0, 0)),
                pl.BlockSpec(bsq.shape, lambda g: (0, 0)),
                pl.BlockSpec(wcomb.shape, lambda g: (0, 0)),
            ],
            out_specs=pl.BlockSpec((batch_block, Cout, HW),
                                   lambda g: (g, 0, 0)),
        ),
        compiler_params=pltpu.CompilerParams(
            dimension_semantics=("parallel",)),
        cost_estimate=cost,
    )(x, wsq, bsq, wcomb)

    return out.reshape(N, Cout, H, W)     # free reshape back to NCHW


def fire_reference(x_nchw, oihw_params):
    """Pure-JAX/XLA reference (NCHW, OIHW) mirroring the PyTorch forward."""
    (wsq, bsq), (w1, b1), (w3, b3) = oihw_params

    def conv_relu(x, w, b, pad):
        y = jax.lax.conv_general_dilated(
            x, w, window_strides=(1, 1), padding=[(pad, pad), (pad, pad)],
            dimension_numbers=("NCHW", "OIHW", "NCHW"))
        return jax.nn.relu(y + b.reshape(1, -1, 1, 1))

    s = conv_relu(x_nchw, wsq, bsq, 0)
    e1 = conv_relu(s, w1, b1, 0)
    e3 = conv_relu(s, w3, b3, 1)
    return jnp.concatenate([e1, e3], axis=1)


if __name__ == "__main__":
    # Fire(in_channels=64, squeeze=8, expand1x1=32, expand3x3=32)
    Cin, H, W = 64, 16, 16
    Csq, C1, C3 = 8, 32, 32

    key = jax.random.PRNGKey(0)
    k_sq, k_e1, k_e3, kb1, kb2, kb3, k_x = jax.random.split(key, 7)

    # Deterministic kaiming_normal_ (fan_in mode, relu gain) * 0.1; small
    # non-zero biases so the bias-folding path is actually exercised.
    def kaiming(k, shape, fan_in):
        return (jax.random.normal(k, shape, jnp.float32)
                * ((2.0 / fan_in) ** 0.5) * 0.1)

    w_sq_oihw = kaiming(k_sq, (Csq, Cin, 1, 1), Cin * 1 * 1)
    w_e1_oihw = kaiming(k_e1, (C1, Csq, 1, 1), Csq * 1 * 1)
    w_e3_oihw = kaiming(k_e3, (C3, Csq, 3, 3), Csq * 3 * 3)
    b_sq = 0.05 * jax.random.normal(kb1, (Csq,), jnp.float32)
    b_e1 = 0.05 * jax.random.normal(kb2, (C1,), jnp.float32)
    b_e3 = 0.05 * jax.random.normal(kb3, (C3,), jnp.float32)
    oihw = ((w_sq_oihw, b_sq), (w_e1_oihw, b_e1), (w_e3_oihw, b_e3))

    params_f32 = pack_fire_params(w_sq_oihw, b_sq, w_e1_oihw, b_e1,
                                  w_e3_oihw, b_e3, dtype=jnp.float32)
    params_bf16 = pack_fire_params(w_sq_oihw, b_sq, w_e1_oihw, b_e1,
                                   w_e3_oihw, b_e3, dtype=jnp.bfloat16)

    # --- test 1: f32, N=2 (default Bt=1 -> 2 parallel grid steps) -----------
    x2 = jax.random.normal(k_x, (2, Cin, H, W), jnp.float32)
    out2 = jax.block_until_ready(fire_forward(x2, params_f32))
    ref2 = jax.block_until_ready(fire_reference(x2, oihw))
    assert out2.shape == (2, C1 + C3, H, W), out2.shape
    assert jnp.allclose(out2, ref2, rtol=5e-3, atol=5e-4), \
        float(jnp.max(jnp.abs(out2 - ref2)))

    # --- test 2: f32, N=4 (default Bt=2 -> batch folded onto lanes) ---------
    x4 = jax.random.normal(jax.random.PRNGKey(1), (4, Cin, H, W), jnp.float32)
    out4 = jax.block_until_ready(fire_forward(x4, params_f32))
    ref4 = jax.block_until_ready(fire_reference(x4, oihw))
    assert out4.shape == (4, C1 + C3, H, W), out4.shape
    assert jnp.allclose(out4, ref4, rtol=5e-3, atol=5e-4), \
        float(jnp.max(jnp.abs(out4 - ref4)))

    # --- test 3: bf16 MXU feed (valid on v5e/v6e/v7x), looser tolerance -----
    out_bf = jax.block_until_ready(fire_forward(x4, params_bf16))
    assert out_bf.shape == (4, C1 + C3, H, W), out_bf.shape
    assert jnp.allclose(out_bf, ref4, rtol=5e-2, atol=1e-2), \
        float(jnp.max(jnp.abs(out_bf - ref4)))

    print("KERNEL_OK")
</pallas_src>

<mosaic_0001>
module attributes {stable_mosaic.version = 11 : i64} {
  func.func @fire_kernel(%arg0: i32, %arg1: memref<1x64x256xf32, #tpu.memory_space<vmem>>, %arg2: memref<8x64xf32, #tpu.memory_space<vmem>>, %arg3: memref<8x1xf32, #tpu.memory_space<vmem>>, %arg4: memref<64x73xf32, #tpu.memory_space<vmem>>, %arg5: memref<1x64x256xf32, #tpu.memory_space<vmem>>) attributes {dimension_semantics = [#tpu.dimension_semantics<parallel>], iteration_bounds = array<i64: 2>, scalar_prefetch = 0 : i64, scratch_operands = 0 : i64, tpu.core_type = #tpu.core_type<tc>, window_params = [{transform_indices = @transform_0, window_bounds = array<i64: 1, 64, 256>}, {pipeline_mode = #tpu.pipeline_mode<synchronous>, transform_indices = @transform_1, window_bounds = array<i64: 8, 64>}, {pipeline_mode = #tpu.pipeline_mode<synchronous>, transform_indices = @transform_2, window_bounds = array<i64: 8, 1>}, {pipeline_mode = #tpu.pipeline_mode<synchronous>, transform_indices = @transform_3, window_bounds = array<i64: 64, 73>}, {transform_indices = @transform_4, window_bounds = array<i64: 1, 64, 256>}]} {
    %c0 = arith.constant 0 : index
    %c0_0 = arith.constant 0 : index
    %c0_1 = arith.constant 0 : index
    %0 = vector.load %arg1[%c0, %c0_0, %c0_1] : memref<1x64x256xf32, #tpu.memory_space<vmem>>, vector<1x64x256xf32>
    %1 = vector.shape_cast %0 : vector<1x64x256xf32> to vector<64x256xf32>
    %c0_2 = arith.constant 0 : index
    %c0_3 = arith.constant 0 : index
    %2 = vector.load %arg2[%c0_2, %c0_3] : memref<8x64xf32, #tpu.memory_space<vmem>>, vector<8x64xf32>
    %cst = arith.constant dense<0.000000e+00> : vector<8x256xf32>
    %3 = tpu.matmul %2, %1, %cst {dimension_numbers = #tpu.dot_dimension_numbers<[1], [0], [0], [1], [0, 0, 1, 1], [], []>} : vector<8x64xf32>, vector<64x256xf32>, vector<8x256xf32> -> vector<8x256xf32>
    %c0_4 = arith.constant 0 : index
    %c0_5 = arith.constant 0 : index
    %4 = vector.load %arg3[%c0_4, %c0_5] : memref<8x1xf32, #tpu.memory_space<vmem>>, vector<8x1xf32>
    %5 = vector.broadcast %4 : vector<8x1xf32> to vector<8x256xf32>
    %6 = arith.addf %3, %5 : vector<8x256xf32>
    %cst_6 = arith.constant 0.000000e+00 : f32
    %7 = vector.broadcast %cst_6 : f32 to vector<8x256xf32>
    %8 = arith.maximumf %6, %7 : vector<8x256xf32>
    %9 = tpu.iota {dimensions = array<i32: 1>} : vector<1x256xi32>
    %c256_i32 = arith.constant 256 : i32
    %c0_i32 = arith.constant 0 : i32
    %10 = arith.cmpi eq, %c256_i32, %c0_i32 : i32
    %c1_i32 = arith.constant 1 : i32
    %11 = arith.select %10, %c1_i32, %c256_i32 : i32
    %12 = vector.broadcast %11 : i32 to vector<1x256xi32>
    %13 = arith.remsi %9, %12 : vector<1x256xi32>
    %c0_i32_7 = arith.constant 0 : i32
    %14 = vector.broadcast %c0_i32_7 : i32 to vector<1x256xi32>
    %15 = arith.cmpi ne, %13, %14 : vector<1x256xi32>
    %c0_i32_8 = arith.constant 0 : i32
    %16 = vector.broadcast %c0_i32_8 : i32 to vector<1x256xi32>
    %17 = arith.cmpi slt, %13, %16 : vector<1x256xi32>
    %c0_i32_9 = arith.constant 0 : i32
    %18 = arith.cmpi slt, %11, %c0_i32_9 : i32
    %19 = vector.broadcast %18 : i1 to vector<1x256xi1>
    %20 = vector.broadcast %19 : vector<1x256xi1> to vector<1x256xi1>
    %21 = arith.xori %17, %20 : vector<1x256xi1>
    %22 = arith.andi %21, %15 : vector<1x256xi1>
    %23 = vector.broadcast %11 : i32 to vector<1x256xi32>
    %24 = arith.addi %13, %23 : vector<1x256xi32>
    %25 = arith.select %22, %24, %13 : vector<1x256xi1>, vector<1x256xi32>
    %c16_i32 = arith.constant 16 : i32
    %c0_i32_10 = arith.constant 0 : i32
    %26 = arith.cmpi eq, %c16_i32, %c0_i32_10 : i32
    %c1_i32_11 = arith.constant 1 : i32
    %27 = arith.select %26, %c1_i32_11, %c16_i32 : i32
    %28 = vector.broadcast %27 : i32 to vector<1x256xi32>
    %29 = arith.remsi %9, %28 : vector<1x256xi32>
    %c0_i32_12 = arith.constant 0 : i32
    %30 = vector.broadcast %c0_i32_12 : i32 to vector<1x256xi32>
    %31 = arith.cmpi ne, %29, %30 : vector<1x256xi32>
    %c0_i32_13 = arith.constant 0 : i32
    %32 = vector.broadcast %c0_i32_13 : i32 to vector<1x256xi32>
    %33 = arith.cmpi slt, %29, %32 : vector<1x256xi32>
    %c0_i32_14 = arith.constant 0 : i32
    %34 = arith.cmpi slt, %27, %c0_i32_14 : i32
    %35 = vector.broadcast %34 : i1 to vector<1x256xi1>
    %36 = vector.broadcast %35 : vector<1x256xi1> to vector<1x256xi1>
    %37 = arith.xori %33, %36 : vector<1x256xi1>
    %38 = arith.andi %37, %31 : vector<1x256xi1>
    %39 = vector.broadcast %27 : i32 to vector<1x256xi32>
    %40 = arith.addi %29, %39 : vector<1x256xi32>
    %41 = arith.select %38, %40, %29 : vector<1x256xi1>, vector<1x256xi32>
    %c16_i32_15 = arith.constant 16 : i32
    %42 = vector.broadcast %c16_i32_15 : i32 to vector<1x256xi32>
    %43 = arith.cmpi sge, %25, %42 : vector<1x256xi32>
    %c240_i32 = arith.constant 240 : i32
    %44 = vector.broadcast %c240_i32 : i32 to vector<1x256xi32>
    %45 = arith.cmpi slt, %25, %44 : vector<1x256xi32>
    %c1_i32_16 = arith.constant 1 : i32
    %46 = vector.broadcast %c1_i32_16 : i32 to vector<1x256xi32>
    %47 = arith.cmpi sge, %41, %46 : vector<1x256xi32>
    %c14_i32 = arith.constant 14 : i32
    %48 = vector.broadcast %c14_i32 : i32 to vector<1x256xi32>
    %49 = arith.cmpi sle, %41, %48 : vector<1x256xi32>
    %c17_i32 = arith.constant 17 : i32
    %50 = tpu.dynamic_rotate %8 by %c17_i32 dim 1 : vector<8x256xf32>, i32 -> vector<8x256xf32>
    %51 = arith.andi %43, %47 : vector<1x256xi1>
    %cst_17 = arith.constant 0.000000e+00 : f32
    %52 = vector.shape_cast %51 : vector<1x256xi1> to vector<1x256xi1>
    %53 = vector.broadcast %52 : vector<1x256xi1> to vector<8x256xi1>
    %54 = vector.broadcast %cst_17 : f32 to vector<8x256xf32>
    %55 = arith.select %53, %50, %54 : vector<8x256xi1>, vector<8x256xf32>
    %c16_i32_18 = arith.constant 16 : i32
    %56 = tpu.dynamic_rotate %8 by %c16_i32_18 dim 1 : vector<8x256xf32>, i32 -> vector<8x256xf32>
    %cst_19 = arith.constant 0.000000e+00 : f32
    %57 = vector.shape_cast %43 : vector<1x256xi1> to vector<1x256xi1>
    %58 = vector.broadcast %57 : vector<1x256xi1> to vector<8x256xi1>
    %59 = vector.broadcast %cst_19 : f32 to vector<8x256xf32>
    %60 = arith.select %58, %56, %59 : vector<8x256xi1>, vector<8x256xf32>
    %c15_i32 = arith.constant 15 : i32
    %61 = tpu.dynamic_rotate %8 by %c15_i32 dim 1 : vector<8x256xf32>, i32 -> vector<8x256xf32>
    %62 = arith.andi %43, %49 : vector<1x256xi1>
    %cst_20 = arith.constant 0.000000e+00 : f32
    %63 = vector.shape_cast %62 : vector<1x256xi1> to vector<1x256xi1>
    %64 = vector.broadcast %63 : vector<1x256xi1> to vector<8x256xi1>
    %65 = vector.broadcast %cst_20 : f32 to vector<8x256xf32>
    %66 = arith.select %64, %61, %65 : vector<8x256xi1>, vector<8x256xf32>
    %c1_i32_21 = arith.constant 1 : i32
    %67 = tpu.dynamic_rotate %8 by %c1_i32_21 dim 1 : vector<8x256xf32>, i32 -> vector<8x256xf32>
    %cst_22 = arith.constant 0.000000e+00 : f32
    %68 = vector.shape_cast %47 : vector<1x256xi1> to vector<1x256xi1>
    %69 = vector.broadcast %68 : vector<1x256xi1> to vector<8x256xi1>
    %70 = vector.broadcast %cst_22 : f32 to vector<8x256xf32>
    %71 = arith.select %69, %67, %70 : vector<8x256xi1>, vector<8x256xf32>
    %c255_i32 = arith.constant 255 : i32
    %72 = tpu.dynamic_rotate %8 by %c255_i32 dim 1 : vector<8x256xf32>, i32 -> vector<8x256xf32>
    %cst_23 = arith.constant 0.000000e+00 : f32
    %73 = vector.shape_cast %49 : vector<1x256xi1> to vector<1x256xi1>
    %74 = vector.broadcast %73 : vector<1x256xi1> to vector<8x256xi1>
    %75 = vector.broadcast %cst_23 : f32 to vector<8x256xf32>
    %76 = arith.select %74, %72, %75 : vector<8x256xi1>, vector<8x256xf32>
    %c241_i32 = arith.constant 241 : i32
    %77 = tpu.dynamic_rotate %8 by %c241_i32 dim 1 : vector<8x256xf32>, i32 -> vector<8x256xf32>
    %78 = arith.andi %45, %47 : vector<1x256xi1>
    %cst_24 = arith.constant 0.000000e+00 : f32
    %79 = vector.shape_cast %78 : vector<1x256xi1> to vector<1x256xi1>
    %80 = vector.broadcast %79 : vector<1x256xi1> to vector<8x256xi1>
    %81 = vector.broadcast %cst_24 : f32 to vector<8x256xf32>
    %82 = arith.select %80, %77, %81 : vector<8x256xi1>, vector<8x256xf32>
    %c240_i32_25 = arith.constant 240 : i32
    %83 = tpu.dynamic_rotate %8 by %c240_i32_25 dim 1 : vector<8x256xf32>, i32 -> vector<8x256xf32>
    %cst_26 = arith.constant 0.000000e+00 : f32
    %84 = vector.shape_cast %45 : vector<1x256xi1> to vector<1x256xi1>
    %85 = vector.broadcast %84 : vector<1x256xi1> to vector<8x256xi1>
    %86 = vector.broadcast %cst_26 : f32 to vector<8x256xf32>
    %87 = arith.select %85, %83, %86 : vector<8x256xi1>, vector<8x256xf32>
    %c239_i32 = arith.constant 239 : i32
    %88 = tpu.dynamic_rotate %8 by %c239_i32 dim 1 : vector<8x256xf32>, i32 -> vector<8x256xf32>
    %89 = arith.andi %45, %49 : vector<1x256xi1>
    %cst_27 = arith.constant 0.000000e+00 : f32
    %90 = vector.shape_cast %89 : vector<1x256xi1> to vector<1x256xi1>
    %91 = vector.broadcast %90 : vector<1x256xi1> to vector<8x256xi1>
    %92 = vector.broadcast %cst_27 : f32 to vector<8x256xf32>
    %93 = arith.select %91, %88, %92 : vector<8x256xi1>, vector<8x256xf32>
    %cst_28 = arith.constant 1.000000e+00 : f32
    %94 = vector.broadcast %cst_28 : f32 to vector<1x256xf32>
    %95 = tpu.concatenate %55, %60, %66, %71, %8, %76, %82, %87, %93, %94 in 0 : vector<8x256xf32>, vector<8x256xf32>, vector<8x256xf32>, vector<8x256xf32>, vector<8x256xf32>, vector<8x256xf32>, vector<8x256xf32>, vector<8x256xf32>, vector<8x256xf32>, vector<1x256xf32> -> vector<73x256xf32>
    %c0_29 = arith.constant 0 : index
    %c0_30 = arith.constant 0 : index
    %96 = vector.load %arg4[%c0_29, %c0_30] : memref<64x73xf32, #tpu.memory_space<vmem>>, vector<64x73xf32>
    %cst_31 = arith.constant dense<0.000000e+00> : vector<64x256xf32>
    %97 = tpu.matmul %96, %95, %cst_31 {dimension_numbers = #tpu.dot_dimension_numbers<[1], [0], [0], [1], [0, 0, 1, 1], [], []>} : vector<64x73xf32>, vector<73x256xf32>, vector<64x256xf32> -> vector<64x256xf32>
    %cst_32 = arith.constant 0.000000e+00 : f32
    %98 = vector.broadcast %cst_32 : f32 to vector<64x256xf32>
    %99 = arith.maximumf %97, %98 : vector<64x256xf32>
    %c0_33 = arith.constant 0 : index
    %c0_34 = arith.constant 0 : index
    %c0_35 = arith.constant 0 : index
    %100 = vector.load %arg5[%c0_33, %c0_34, %c0_35] : memref<1x64x256xf32, #tpu.memory_space<vmem>>, vector<1x64x256xf32>
    %101 = vector.shape_cast %100 : vector<1x64x256xf32> to vector<64x256xf32>
    %102 = vector.shape_cast %99 : vector<64x256xf32> to vector<1x64x256xf32>
    tpu.vector_store %arg5[%c0_33, %c0_34, %c0_35], %102 {strides = array<i32>} : memref<1x64x256xf32, #tpu.memory_space<vmem>>, vector<1x64x256xf32>,
    return
  }
  func.func @transform_0(%arg0: i32) -> (i32, i32, i32) {
    %c0_i32 = arith.constant 0 : i32
    %c0_i32_0 = arith.constant 0 : i32
    %c0_i32_1 = arith.constant 0 : i32
    return %arg0, %c0_i32, %c0_i32_0 : i32, i32, i32
  }
  func.func @transform_1(%arg0: i32) -> (i32, i32) {
    %c0_i32 = arith.constant 0 : i32
    %c0_i32_0 = arith.constant 0 : i32
    %c0_i32_1 = arith.constant 0 : i32
    return %c0_i32, %c0_i32_0 : i32, i32
  }
  func.func @transform_2(%arg0: i32) -> (i32, i32) {
    %c0_i32 = arith.constant 0 : i32
    %c0_i32_0 = arith.constant 0 : i32
    %c0_i32_1 = arith.constant 0 : i32
    return %c0_i32, %c0_i32_0 : i32, i32
  }
  func.func @transform_3(%arg0: i32) -> (i32, i32) {
    %c0_i32 = arith.constant 0 : i32
    %c0_i32_0 = arith.constant 0 : i32
    %c0_i32_1 = arith.constant 0 : i32
    return %c0_i32, %c0_i32_0 : i32, i32
  }
  func.func @transform_4(%arg0: i32) -> (i32, i32, i32) {
    %c0_i32 = arith.constant 0 : i32
    %c0_i32_0 = arith.constant 0 : i32
    %c0_i32_1 = arith.constant 0 : i32
    return %arg0, %c0_i32, %c0_i32_0 : i32, i32, i32
  }
}

</mosaic_0001>

<llo_original>
// kernel: tpu_custom_call.1
$region0: #{tpu_custom_call.1}
  #allocation0 [shape = 'u32[]', space=smem, size = 0x4, offset = 0x4, fixed_abs, tag = 'smem constant byte address 0x4 - core index']
  #allocation1 [shape = 'u32[144,128]{1,0:T(1,128)}', space=vmem, size = 0x12000, scoped, tag = 'internal scratch']
  %s0 = inlined_call_operand.hbm [shape: f32[2,64,256], index: 0, kind: input, shape index: {}]
  %s1 = inlined_call_operand.vmem [shape: f32[8,64], index: 1, kind: input, shape index: {}]
  %s2 = inlined_call_operand.vmem [shape: f32[8,1], index: 2, kind: input, shape index: {}]
  %s3 = inlined_call_operand.hbm [shape: f32[64,73], index: 3, kind: input, shape index: {}]
  %s4 = inlined_call_operand.hbm [shape: f32[2,64,256], index: 4, kind: output, shape index: {}]
  %s5 = sld [smem:[#allocation0]]
  $region57: #{tpu_custom_call.1} parent=0
    _
  %s7 = ssub.s32 1, %s5
  %s8 = scalar_select 0, %s7, %s5
  $region1: #{tpu_custom_call.1} parent=0
    #allocation2 [shape = 'u8[131072]{0}', space=vmem, size = 0x20000, scoped, tag = 'input window, operand 0']
    #allocation3 [shape = 's32[2]{0}', space=sflag, size = 0x8, scoped, tag = 'scoped memory for tpu_custom_call.1']
    #allocation4 [shape = 's32[2]{0}', space=sflag, size = 0x8, scoped, tag = 'scoped memory for tpu_custom_call.1']
    #allocation5 [shape = 'u8[32768]{0}', space=vmem, size = 0x8000, scoped, tag = 'input window, operand 3, single buffered']
    #allocation6 [shape = 's32[1]{0}', space=sflag, size = 0x4, scoped, tag = 'scoped memory for tpu_custom_call.1']
    #allocation7 [shape = 'u8[131072]{0}', space=vmem, size = 0x20000, scoped, tag = 'output window, operand 0']
    %9 = vsyncpa [#allocation3], 0
    %s10 = scalar_lea.sflag [#allocation3], 1
    %11 = vsyncpa %s10, 0
    %12 = vsyncpa [#allocation6], 0
    %13 = vsyncpa [#allocation4], 0
    %s14 = scalar_lea.sflag [#allocation4], 1
    %15 = vsyncpa %s14, 0
    loop: start=0, step=1, limit=4
    $region2: #{tpu_custom_call.1} parent=1 // loop_pre_header
      _
    $region3: #{tpu_custom_call.1} parent=1 // loop_header
      %s17 = sphi 0, %s21
      %p18 = scmp.ge.s32.totalorder %s17, 4
      %s27 = sphi 0, %s29
      %s30 = sphi 0, %s27
      %s31 = sphi 0, %s30
      %s47 = sphi 0, %s31
      %s51 = sphi 0, %s51
      %s53 = sphi 0, %s51
      %s54 = sphi 0, %s53
      %s68 = sphi 0, %s54
      %s72 = sphi 0, %s72
      %s74 = sphi 0, %s72
      %s75 = sphi 0, %s74
      %s89 = sphi 0, %s75
      %s93 = sphi 0, %s93
      %s95 = sphi 0, %s93
      %s96 = sphi 0, %s95
      %s110 = sphi 0, %s96
      %s116 = sphi 0, %s118
      %s119 = sphi 0, %s116
      %s120 = sphi 0, %s119
      %s136 = sphi 0, %s120
    $region4: #{tpu_custom_call.1} parent=1 // loop_header_branch
      %20 = sbr.rel (%p18) target = $region8
    $region5: #{tpu_custom_call.1} parent=1 // loop_body
      %s22 = ssub.s32 %s17, 1
      %s23 = ssub.s32 %s17, 2
      %s24 = sadd.s32 %s17, 1
      %s25 = ssub.s32 %s17, %s24
      %p26 = scmp.eq.s32.totalorder %s25, 0
      %s28 = sadd.s32 %s27, 1
      %s29 = scalar_select %p26, %s27, %s28
      %p32 = pneg %p26
      %p33 = scmp.eq.s32.totalorder %s17, 1
      %p34 = por %p32, %p33
      %p35 = scmp.ne.s32.totalorder %s27, %s30
      %p36 = scmp.eq.s32.totalorder %s17, 0
      %p37 = por %p35, %p36
      %p38 = scmp.ne.s32.totalorder %s27, %s30
      %p39 = scmp.eq.s32.totalorder %s22, 1
      %p40 = por %p38, %p39
      %p41 = scmp.ne.s32.totalorder %s30, %s31
      %p42 = scmp.eq.s32.totalorder %s22, 0
      %p43 = por %p41, %p42
      %p44 = scmp.ne.s32.totalorder %s30, %s31
      %p45 = scmp.eq.s32.totalorder %s23, 1
      %p46 = por %p44, %p45
      %p48 = scmp.ne.s32.totalorder %s31, %s47
      %p49 = scmp.eq.s32.totalorder %s23, 0
      %p50 = por %p48, %p49
      %s52 = sadd.s32 %s51, 1
      %p55 = scmp.eq.s32.totalorder %s17, 1
      %p56 = scmp.ne.s32.totalorder %s51, %s53
      %p57 = scmp.eq.s32.totalorder %s17, 0
      %p58 = por %p56, %p57
      %p59 = scmp.ne.s32.totalorder %s51, %s53
      %p60 = scmp.eq.s32.totalorder %s22, 1
      %p61 = por %p59, %p60
      %p62 = scmp.ne.s32.totalorder %s53, %s54
      %p63 = scmp.eq.s32.totalorder %s22, 0
      %p64 = por %p62, %p63
      %p65 = scmp.ne.s32.totalorder %s53, %s54
      %p66 = scmp.eq.s32.totalorder %s23, 1
      %p67 = por %p65, %p66
      %p69 = scmp.ne.s32.totalorder %s54, %s68
      %p70 = scmp.eq.s32.totalorder %s23, 0
      %p71 = por %p69, %p70
      %s73 = sadd.s32 %s72, 1
      %p76 = scmp.eq.s32.totalorder %s17, 1
      %p77 = scmp.ne.s32.totalorder %s72, %s74
      %p78 = scmp.eq.s32.totalorder %s17, 0
      %p79 = por %p77, %p78
      %p80 = scmp.ne.s32.totalorder %s72, %s74
      %p81 = scmp.eq.s32.totalorder %s22, 1
      %p82 = por %p80, %p81
      %p83 = scmp.ne.s32.totalorder %s74, %s75
      %p84 = scmp.eq.s32.totalorder %s22, 0
      %p85 = por %p83, %p84
      %p86 = scmp.ne.s32.totalorder %s74, %s75
      %p87 = scmp.eq.s32.totalorder %s23, 1
      %p88 = por %p86, %p87
      %p90 = scmp.ne.s32.totalorder %s75, %s89
      %p91 = scmp.eq.s32.totalorder %s23, 0
      %p92 = por %p90, %p91
      %s94 = sadd.s32 %s93, 1
      %p97 = scmp.eq.s32.totalorder %s17, 1
      %p98 = scmp.ne.s32.totalorder %s93, %s95
      %p99 = scmp.eq.s32.totalorder %s17, 0
      %p100 = por %p98, %p99
      %p101 = scmp.ne.s32.totalorder %s93, %s95
      %p102 = scmp.eq.s32.totalorder %s22, 1
      %p103 = por %p101, %p102
      %p104 = scmp.ne.s32.totalorder %s95, %s96
      %p105 = scmp.eq.s32.totalorder %s22, 0
      %p106 = por %p104, %p105
      %p107 = scmp.ne.s32.totalorder %s95, %s96
      %p108 = scmp.eq.s32.totalorder %s23, 1
      %p109 = por %p107, %p108
      %p111 = scmp.ne.s32.totalorder %s96, %s110
      %p112 = scmp.eq.s32.totalorder %s23, 0
      %p113 = por %p111, %p112
      %s114 = ssub.s32 %s17, %s24
      %p115 = scmp.eq.s32.totalorder %s114, 0
      %s117 = sadd.s32 %s116, 1
      %s118 = scalar_select %p115, %s116, %s117
      %p121 = pneg %p115
      %p122 = scmp.eq.s32.totalorder %s17, 1
      %p123 = por %p121, %p122
      %p124 = scmp.ne.s32.totalorder %s116, %s119
      %p125 = scmp.eq.s32.totalorder %s17, 0
      %p126 = por %p124, %p125
      %p127 = scmp.ne.s32.totalorder %s116, %s119
      %p128 = scmp.eq.s32.totalorder %s22, 1
      %p129 = por %p127, %p128
      %p130 = scmp.ne.s32.totalorder %s119, %s120
      %p131 = scmp.eq.s32.totalorder %s22, 0
      %p132 = por %p130, %p131
      %p133 = scmp.ne.s32.totalorder %s119, %s120
      %p134 = scmp.eq.s32.totalorder %s23, 1
      %p135 = por %p133, %p134
      %p137 = scmp.ne.s32.totalorder %s120, %s136
      %p138 = scmp.eq.s32.totalorder %s23, 0
      %p139 = por %p137, %p138
      %p140 = scmp.le.s32.totalorder 1, %s17
      %p141 = scmp.lt.s32.totalorder %s17, 3
      %p142 = pnand %p140, %p141
      %p143 = pneg %p142
      // Predicated region
      $region9: #{tpu_custom_call.1} parent=5 // pred_check
        _
      $region10: #{tpu_custom_call.1} parent=5 // pred_check_branch
        %145 = sbr.rel (%p142) target = $region12
      $region11: #{tpu_custom_call.1} parent=5 // pred_region
        %s146 = ssub.s32 %s17, 1
        // Predicated region
        $region13: #{tpu_custom_call.1} parent=11 // pred_check
          %p147 = pneg %p64
        $region14: #{tpu_custom_call.1} parent=11 // pred_check_branch
          %149 = sbr.rel (%p147) target = $region16
        $region15: #{tpu_custom_call.1} parent=11 // pred_region
          _
        $region16: #{tpu_custom_call.1} parent=11 // pred_fallthru
          _
        // Predicated region
        $region17: #{tpu_custom_call.1} parent=11 // pred_check
          %p150 = pneg %p85
        $region18: #{tpu_custom_call.1} parent=11 // pred_check_branch
          %152 = sbr.rel (%p150) target = $region20
        $region19: #{tpu_custom_call.1} parent=11 // pred_region
          _
        $region20: #{tpu_custom_call.1} parent=11 // pred_fallthru
          _
        // Predicated region
        $region21: #{tpu_custom_call.1} parent=11 // pred_check
          %p153 = pneg %p106
        $region22: #{tpu_custom_call.1} parent=11 // pred_check_branch
          %155 = sbr.rel (%p153) target = $region24
        $region23: #{tpu_custom_call.1} parent=11 // pred_region
          %s157 = ssub.s32 1024, 1024
          %158 = vsyncadd [#allocation6], %s157
          %s159 = sshll.u32 [#allocation5], 4
          %s160 = int_to_ptr.vmem [resolvable:$true] %s159
          %165 = dma.hbm_to_vmem [thread:$0]  %s3, 1024, %s160, [#allocation6], 128, 128, 8
        $region24: #{tpu_custom_call.1} parent=11 // pred_fallthru
          _
      $region12: #{tpu_custom_call.1} parent=5 // pred_fallthru
        _
      %p166 = scmp.lt.s32.totalorder %s17, 2
      // Predicated region
      $region25: #{tpu_custom_call.1} parent=5 // pred_check
        %p167 = pneg %p166
      $region26: #{tpu_custom_call.1} parent=5 // pred_check_branch
        %169 = sbr.rel (%p167) target = $region28
      $region27: #{tpu_custom_call.1} parent=5 // pred_region
        // Predicated region
        $region29: #{tpu_custom_call.1} parent=27 // pred_check
          %p170 = pneg %p37
        $region30: #{tpu_custom_call.1} parent=27 // pred_check_branch
          %172 = sbr.rel (%p170) target = $region32
        $region31: #{tpu_custom_call.1} parent=27 // pred_region
          %s173 = sand.u32 %s27, 1
          %s174 = scalar_lea.sflag [#allocation3], %s173
          %s175 = sand.u32 %s27, 1
          %s176 = smul.addr %s175, 128
          %s177 = scalar_lea.vmem [#allocation2], %s176
          %s179 = ssub.s32 2048, 2048
          %180 = vsyncadd %s174, %s179
          %s181 = smul.addr %s17, 16
          %s182 = smul.addr %s181, 128
          %s183 = scalar_lea.hbm %s0, %s182
          %s184 = sshll.u32 %s177, 4
          %s185 = int_to_ptr.vmem [resolvable:$true] %s184
          %190 = dma.hbm_to_vmem [thread:$0]  %s183, 2048, %s185, %s174, 256, 256, 16
        $region32: #{tpu_custom_call.1} parent=27 // pred_fallthru
          _
      $region28: #{tpu_custom_call.1} parent=5 // pred_fallthru
        _
      %p191 = scmp.le.s32.totalorder 1, %s17
      %p192 = scmp.lt.s32.totalorder %s17, 3
      %p193 = pnand %p191, %p192
      %p194 = pneg %p193
      // Predicated region
      $region33: #{tpu_custom_call.1} parent=5 // pred_check
        _
      $region34: #{tpu_custom_call.1} parent=5 // pred_check_branch
        %196 = sbr.rel (%p193) target = $region36
      $region35: #{tpu_custom_call.1} parent=5 // pred_region
        %s197 = ssub.s32 %s17, 1
        %s198 = sand.u32 %s30, 1
        %s199 = scalar_lea.sflag [#allocation3], %s198
        %s200 = sand.u32 %s30, 1
        %s201 = smul.addr %s200, 128
        %s202 = scalar_lea.vmem [#allocation2], %s201
        // Predicated region
        $region37: #{tpu_custom_call.1} parent=35 // pred_check
          %p203 = pneg %p43
        $region38: #{tpu_custom_call.1} parent=35 // pred_check_branch
          %205 = sbr.rel (%p203) target = $region40
        $region39: #{tpu_custom_call.1} parent=35 // pred_region
          %206 = dma.done %s199, 2048
        $region40: #{tpu_custom_call.1} parent=35 // pred_fallthru
          _
        // Predicated region
        $region41: #{tpu_custom_call.1} parent=35 // pred_check
          %p207 = pneg %p106
        $region42: #{tpu_custom_call.1} parent=35 // pred_check_branch
          %209 = sbr.rel (%p207) target = $region44
        $region43: #{tpu_custom_call.1} parent=35 // pred_region
          %210 = dma.done [#allocation6], 1024
        $region44: #{tpu_custom_call.1} parent=35 // pred_fallthru
          _
        %s211 = sand.u32 %s30, 1
        %s212 = scalar_lea.sflag [#allocation3], %s211
        %s213 = sand.u32 %s30, 1
        %s214 = smul.addr %s213, 128
        %s215 = scalar_lea.vmem [#allocation2], %s214
        %p216 = pneg %p43
        %p217 = pneg %p40
        %p218 = pneg %p64
        %p219 = pneg %p61
        %p220 = pneg %p85
        %p221 = pneg %p82
        %p222 = pneg %p106
        %p223 = pneg %p103
        %p224 = pneg %p132
        %p225 = pneg %p129
        %s226 = sand.u32 %s119, 1
        %s227 = scalar_lea.sflag [#allocation4], %s226
        %s228 = sand.u32 %s119, 1
        %s229 = smul.addr %s228, 128
        %s230 = scalar_lea.vmem [#allocation7], %s229
        %v231 = vld [vmem:[%s202] sm:$0xff]
        %v232 = vld [vmem:[%s202 + $0x8] sm:$0xff]
        %v233 = vld [vmem:[%s202 + $0x10] sm:$0xff]
        %v234 = vld [vmem:[%s202 + $0x18] sm:$0xff]
        %v235 = vld [vmem:[%s202 + $0x20] sm:$0xff]
        %v236 = vld [vmem:[%s202 + $0x28] sm:$0xff]
        %v237 = vld [vmem:[%s202 + $0x30] sm:$0xff]
        %v238 = vld [vmem:[%s202 + $0x38] sm:$0xff]
        %v239 = vld [vmem:[%s202 + $0x40] sm:$0xff]
        %v240 = vld [vmem:[%s202 + $0x48] sm:$0xff]
        %v241 = vld [vmem:[%s202 + $0x50] sm:$0xff]
        %v242 = vld [vmem:[%s202 + $0x58] sm:$0xff]
        %v243 = vld [vmem:[%s202 + $0x60] sm:$0xff]
        %v244 = vld [vmem:[%s202 + $0x68] sm:$0xff]
        %v245 = vld [vmem:[%s202 + $0x70] sm:$0xff]
        %v246 = vld [vmem:[%s202 + $0x78] sm:$0xff]
        %v247 = vld [vmem:[%s1] sm:$0xff]
        %v248 = vld [vmem:[%s2] sm:$0xff]
        %250 = vset.pattern.permute.xlu0 0
        %251 = vperm.xlu0 %250, %v248
        %v252 = vpop.permute.xlu0 %251
        %vm254 = vcmask 523264
        %v256 = vsel %vm254, %v247, 0
        %258 = vmatprep.subr.mxu0 %v232
        %259 = vmatpush1.msra.mxu0 %v231
        %260 = vmatprep.subr.mxu0 %v234
        %261 = vmatpush1.msra.mxu0 %v233
        %262 = vmatprep.subr.mxu0 %v236
        %263 = vmatpush1.msra.mxu0 %v235
        %264 = vmatprep.subr.mxu0 %v238
        %265 = vmatpush1.msra.mxu0 %v237
        %266 = vmatprep.subr.mxu0 %v240
        %267 = vmatpush1.msra.mxu0 %v239
        %268 = vmatprep.subr.mxu0 %v242
        %269 = vmatpush1.msra.mxu0 %v241
        %270 = vmatprep.subr.mxu0 %v244
        %271 = vmatpush1.msra.mxu0 %v243
        %272 = vmatprep.subr.mxu0 %v246
        %273 = vmatpush1.msra.mxu0 %v245
        %274 = vmatprep.subr.mxu0 0.0
        %275 = vmatpush1.msra.mxu0 0.0
        %276 = vmatprep.subr.mxu0 0.0
        %277 = vmatpush1.msra.mxu0 0.0
        %278 = vmatprep.subr.mxu0 0.0
        %279 = vmatpush1.msra.mxu0 0.0
        %280 = vmatprep.subr.mxu0 0.0
        %281 = vmatpush1.msra.mxu0 0.0
        %282 = vmatprep.subr.mxu0 0.0
        %283 = vmatpush1.msra.mxu0 0.0
        %284 = vmatprep.subr.mxu0 0.0
        %285 = vmatpush1.msra.mxu0 0.0
        %286 = vmatprep.subr.mxu0 0.0
        %287 = vmatpush1.msra.mxu0 0.0
        %288 = vmatprep.subr.mxu0 0.0
        %289 = vmatpush1.msra.mxu0 0.0
        %290 = vmatprep.subr.mxu0 0.0
        %291 = vmatpush1.msra.mxu0 0.0
        %292 = vmatprep.subr.mxu0 0.0
        %293 = vmatpush1.msra.mxu0 0.0
        %294 = vmatprep.subr.mxu0 0.0
        %295 = vmatpush1.msra.mxu0 0.0
        %296 = vmatprep.subr.mxu0 0.0
        %297 = vmatpush1.msra.mxu0 0.0
        %298 = vmatprep.subr.mxu0 0.0
        %299 = vmatpush1.msra.mxu0 0.0
        %300 = vmatprep.subr.mxu0 0.0
        %301 = vmatpush1.msra.mxu0 0.0
        %302 = vmatprep.subr.mxu0 0.0
        %303 = vmatpush1.msra.mxu0 0.0
        %304 = vmatprep.subr.mxu0 0.0
        %305 = vmatpush1.msra.mxu0 0.0
        %306 = vmatprep.subr.mxu0 0.0
        %307 = vmatpush1.msra.mxu0 0.0
        %308 = vmatprep.subr.mxu0 0.0
        %309 = vmatpush1.msra.mxu0 0.0
        %310 = vmatprep.subr.mxu0 0.0
        %311 = vmatpush1.msra.mxu0 0.0
        %312 = vmatprep.subr.mxu0 0.0
        %313 = vmatpush1.msra.mxu0 0.0
        %314 = vmatprep.subr.mxu0 0.0
        %315 = vmatpush1.msra.mxu0 0.0
        %316 = vmatprep.subr.mxu0 0.0
        %317 = vmatpush1.msra.mxu0 0.0
        %318 = vmatprep.subr.mxu0 0.0
        %319 = vmatpush1.msra.mxu0 0.0
        %320 = vmatprep.subr.mxu0 0.0
        %321 = vmatpush1.msra.mxu0 0.0
        %322 = vmatprep.mubr.f32.mxu0 0.0
        %323 = vmatmul.mubr.f32.gmra.mrb[0].mxu0 %v256
        %v324 = vpop.f32.mrb[0].mxu0
        %v325 = vadd.f32 %v252, %v324
        %v326 = vpop.f32.mrb[0].mxu0
        %v327 = vadd.f32 %v252, %v326
        %328 = vdwg.mxu0
        %v329 = vmax.f32 %v325, 0.0
        %v330 = vmax.f32 %v327, 0.0
        %v331 = vlaneseq
        %v332 = vand.u32 %v331, 127
        %v333 = vadd.s32 %v332, 128
        %vm334 = vcmp.lt.s32.totalorder %v332, 0
        %v335 = vsub.s32 0, %v332
        %v336 = vsel %vm334, %v335, %v332
        %v337 = vshrl.u32 %v336, 8
        %v338 = vand.u32 %v336, 255
        %v339 = vsub.s32 0, %v338
        %v340 = vsel %vm334, %v339, %v338
        %vm341 = vcmp.lt.s32.totalorder %v333, 0
        %v342 = vsub.s32 0, %v333
        %v343 = vsel %vm341, %v342, %v333
        %v344 = vshrl.u32 %v343, 8
        %v345 = vand.u32 %v343, 255
        %v346 = vsub.s32 0, %v345
        %v347 = vsel %vm341, %v346, %v345
        %vm348 = vcmp.ne.s32.totalorder %v340, 0
        %vm349 = vcmp.ne.s32.totalorder %v347, 0
        %vm350 = vcmp.lt.s32.totalorder %v340, 0
        %vm351 = vcmp.lt.s32.totalorder %v347, 0
        %vm352 = vmand %vm350, %vm348
        %vm353 = vmand %vm351, %vm349
        %v354 = vadd.s32 %v340, 256
        %v355 = vadd.s32 %v347, 256
        %v356 = vsel %vm352, %v354, %v340
        %v357 = vsel %vm353, %v355, %v347
        %vm358 = vcmp.lt.s32.totalorder %v332, 0
        %v359 = vsub.s32 0, %v332
        %v360 = vsel %vm358, %v359, %v332
        %v361 = vshrl.u32 %v360, 4
        %v362 = vand.u32 %v360, 15
        %v363 = vsub.s32 0, %v362
        %v364 = vsel %vm358, %v363, %v362
        %vm365 = vcmp.lt.s32.totalorder %v333, 0
        %v366 = vsub.s32 0, %v333
        %v367 = vsel %vm365, %v366, %v333
        %v368 = vshrl.u32 %v367, 4
        %v369 = vand.u32 %v367, 15
        %v370 = vsub.s32 0, %v369
        %v371 = vsel %vm365, %v370, %v369
        %vm372 = vcmp.ne.s32.totalorder %v364, 0
        %vm373 = vcmp.ne.s32.totalorder %v371, 0
        %vm374 = vcmp.lt.s32.totalorder %v364, 0
        %vm375 = vcmp.lt.s32.totalorder %v371, 0
        %vm376 = vmand %vm374, %vm372
        %vm377 = vmand %vm375, %vm373
        %v378 = vadd.s32 %v364, 16
        %v379 = vadd.s32 %v371, 16
        %v380 = vsel %vm376, %v378, %v364
        %v381 = vsel %vm377, %v379, %v371
        %vm382 = vcmp.ge.s32.totalorder %v356, 16
        %vm383 = vcmp.ge.s32.totalorder %v357, 16
        %vm384 = vcmp.lt.s32.totalorder %v356, 240
        %vm385 = vcmp.lt.s32.totalorder %v357, 240
        %vm386 = vcmp.ge.s32.totalorder %v380, 1
        %vm387 = vcmp.ge.s32.totalorder %v381, 1
        %vm388 = vcmp.le.s32.totalorder %v380, 14
        %vm389 = vcmp.le.s32.totalorder %v381, 14
        %390 = vrot.lane.b32.xlu0 %v329, 17
        %v391 = vpop.permute.xlu0 %390
        %392 = vrot.lane.b32.xlu0 %v330, 17
        %v393 = vpop.permute.xlu0 %392
        %vm394 = vcmp.lt.s32.totalorder %v332, 17
        %v395 = vsel %vm394, %v391, %v393
        %v396 = vsel %vm394, %v393, %v391
        %vm397 = vmand %vm382, %vm386
        %vm398 = vmand %vm383, %vm387
        %v399 = vsel %vm397, 1, 0
        %v400 = vsel %vm398, 1, 0
        %vm401 = vcmp.eq.s32.totalorder %v399, 1
        %vm402 = vcmp.eq.s32.totalorder %v400, 1
        %v403 = vsel %vm401, %v396, 0.0
        %v404 = vsel %vm402, %v395, 0.0
        %405 = vrot.lane.b32.xlu0 %v329, 16
        %v406 = vpop.permute.xlu0 %405
        %407 = vrot.lane.b32.xlu0 %v330, 16
        %v408 = vpop.permute.xlu0 %407
        %vm409 = vcmp.lt.s32.totalorder %v332, 16
        %v410 = vsel %vm409, %v406, %v408
        %v411 = vsel %vm409, %v408, %v406
        %v412 = vsel %vm382, 1, 0
        %v413 = vsel %vm383, 1, 0
        %vm414 = vcmp.eq.s32.totalorder %v412, 1
        %vm415 = vcmp.eq.s32.totalorder %v413, 1
        %v416 = vsel %vm414, %v411, 0.0
        %v417 = vsel %vm415, %v410, 0.0
        %418 = vrot.lane.b32.xlu0 %v329, 15
        %v419 = vpop.permute.xlu0 %418
        %420 = vrot.lane.b32.xlu0 %v330, 15
        %v421 = vpop.permute.xlu0 %420
        %vm422 = vcmp.lt.s32.totalorder %v332, 15
        %v423 = vsel %vm422, %v419, %v421
        %v424 = vsel %vm422, %v421, %v419
        %vm425 = vmand %vm382, %vm388
        %vm426 = vmand %vm383, %vm389
        %v427 = vsel %vm425, 1, 0
        %v428 = vsel %vm426, 1, 0
        %vm429 = vcmp.eq.s32.totalorder %v427, 1
        %vm430 = vcmp.eq.s32.totalorder %v428, 1
        %v431 = vsel %vm429, %v424, 0.0
        %v432 = vsel %vm430, %v423, 0.0
        %433 = vrot.lane.b32.xlu0 %v329, 1
        %v434 = vpop.permute.xlu0 %433
        %435 = vrot.lane.b32.xlu0 %v330, 1
        %v436 = vpop.permute.xlu0 %435
        %vm437 = vcmp.lt.s32.totalorder %v332, 1
        %v438 = vsel %vm437, %v434, %v436
        %v439 = vsel %vm437, %v436, %v434
        %v440 = vsel %vm386, 1, 0
        %v441 = vsel %vm387, 1, 0
        %vm442 = vcmp.eq.s32.totalorder %v440, 1
        %vm443 = vcmp.eq.s32.totalorder %v441, 1
        %v444 = vsel %vm442, %v439, 0.0
        %v445 = vsel %vm443, %v438, 0.0
        %446 = vrot.lane.b32.xlu0 %v329, 127
        %v447 = vpop.permute.xlu0 %446
        %448 = vrot.lane.b32.xlu0 %v330, 127
        %v449 = vpop.permute.xlu0 %448
        %vm450 = vcmp.lt.s32.totalorder %v332, 127
        %v451 = vsel %vm450, %v447, %v449
        %v452 = vsel %vm450, %v449, %v447
        %v453 = vsel %vm388, 1, 0
        %v454 = vsel %vm389, 1, 0
        %vm455 = vcmp.eq.s32.totalorder %v453, 1
        %vm456 = vcmp.eq.s32.totalorder %v454, 1
        %v457 = vsel %vm455, %v451, 0.0
        %v458 = vsel %vm456, %v452, 0.0
        %459 = vrot.lane.b32.xlu0 %v329, 113
        %v460 = vpop.permute.xlu0 %459
        %461 = vrot.lane.b32.xlu0 %v330, 113
        %v462 = vpop.permute.xlu0 %461
        %vm463 = vcmp.lt.s32.totalorder %v332, 113
        %v464 = vsel %vm463, %v460, %v462
        %v465 = vsel %vm463, %v462, %v460
        %vm466 = vmand %vm384, %vm386
        %vm467 = vmand %vm385, %vm387
        %v468 = vsel %vm466, 1, 0
        %v469 = vsel %vm467, 1, 0
        %vm470 = vcmp.eq.s32.totalorder %v468, 1
        %vm471 = vcmp.eq.s32.totalorder %v469, 1
        %v472 = vsel %vm470, %v464, 0.0
        %v473 = vsel %vm471, %v465, 0.0
        %474 = vrot.lane.b32.xlu0 %v329, 112
        %v475 = vpop.permute.xlu0 %474
        %476 = vrot.lane.b32.xlu0 %v330, 112
        %v477 = vpop.permute.xlu0 %476
        %vm478 = vcmp.lt.s32.totalorder %v332, 112
        %v479 = vsel %vm478, %v475, %v477
        %v480 = vsel %vm478, %v477, %v475
        %v481 = vsel %vm384, 1, 0
        %v482 = vsel %vm385, 1, 0
        %vm483 = vcmp.eq.s32.totalorder %v481, 1
        %vm484 = vcmp.eq.s32.totalorder %v482, 1
        %v485 = vsel %vm483, %v479, 0.0
        %v486 = vsel %vm484, %v480, 0.0
        %487 = vrot.lane.b32.xlu0 %v329, 111
        %v488 = vpop.permute.xlu0 %487
        %489 = vrot.lane.b32.xlu0 %v330, 111
        %v490 = vpop.permute.xlu0 %489
        %vm491 = vcmp.lt.s32.totalorder %v332, 111
        %v492 = vsel %vm491, %v488, %v490
        %v493 = vsel %vm491, %v490, %v488
        %vm494 = vmand %vm384, %vm388
        %vm495 = vmand %vm385, %vm389
        %v496 = vsel %vm494, 1, 0
        %v497 = vsel %vm495, 1, 0
        %vm498 = vcmp.eq.s32.totalorder %v496, 1
        %vm499 = vcmp.eq.s32.totalorder %v497, 1
        %v500 = vsel %vm498, %v492, 0.0
        %v501 = vsel %vm499, %v493, 0.0
        %v502 = vld [vmem:[#allocation5] sm:$0xff]
        %v503 = vld [vmem:[#allocation5 + $0x8] sm:$0xff]
        %v504 = vld [vmem:[#allocation5 + $0x10] sm:$0xff]
        %v505 = vld [vmem:[#allocation5 + $0x18] sm:$0xff]
        %v506 = vld [vmem:[#allocation5 + $0x20] sm:$0xff]
        %v507 = vld [vmem:[#allocation5 + $0x28] sm:$0xff]
        %v508 = vld [vmem:[#allocation5 + $0x30] sm:$0xff]
        %v509 = vld [vmem:[#allocation5 + $0x38] sm:$0xff]
        %vm510 = vcmask 596992
        %v512 = vsel %vm510, %v502, 0
        %v515 = vsel %vm510, %v503, 0
        %v518 = vsel %vm510, %v504, 0
        %v521 = vsel %vm510, %v505, 0
        %v524 = vsel %vm510, %v506, 0
        %v527 = vsel %vm510, %v507, 0
        %v530 = vsel %vm510, %v508, 0
        %v533 = vsel %vm510, %v509, 0
        %vm535 = vcmask 1040384
        %v537 = vsel %vm535, 1.0, 0
        %539 = vmatprep.subr.mxu0 %v404
        %540 = vmatpush1.msra.mxu0 %v403
        %541 = vmatprep.subr.mxu0 %v417
        %542 = vmatpush1.msra.mxu0 %v416
        %543 = vmatprep.subr.mxu0 %v432
        %544 = vmatpush1.msra.mxu0 %v431
        %545 = vmatprep.subr.mxu0 %v445
        %546 = vmatpush1.msra.mxu0 %v444
        %547 = vmatprep.subr.mxu0 %v330
        %548 = vmatpush1.msra.mxu0 %v329
        %549 = vmatprep.subr.mxu0 %v458
        %550 = vmatpush1.msra.mxu0 %v457
        %551 = vmatprep.subr.mxu0 %v473
        %552 = vmatpush1.msra.mxu0 %v472
        %553 = vmatprep.subr.mxu0 %v486
        %554 = vmatpush1.msra.mxu0 %v485
        %555 = vmatprep.subr.mxu0 %v501
        %556 = vmatpush1.msra.mxu0 %v500
        %557 = vmatprep.subr.mxu0 %v537
        %558 = vmatpush1.msra.mxu0 %v537
        %559 = vmatprep.subr.mxu0 0.0
        %560 = vmatpush1.msra.mxu0 0.0
        %561 = vmatprep.subr.mxu0 0.0
        %562 = vmatpush1.msra.mxu0 0.0
        %563 = vmatprep.subr.mxu0 0.0
        %564 = vmatpush1.msra.mxu0 0.0
        %565 = vmatprep.subr.mxu0 0.0
        %566 = vmatpush1.msra.mxu0 0.0
        %567 = vmatprep.subr.mxu0 0.0
        %568 = vmatpush1.msra.mxu0 0.0
        %569 = vmatprep.subr.mxu0 0.0
        %570 = vmatpush1.msra.mxu0 0.0
        %571 = vmatprep.subr.mxu0 0.0
        %572 = vmatpush1.msra.mxu0 0.0
        %573 = vmatprep.subr.mxu0 0.0
        %574 = vmatpush1.msra.mxu0 0.0
        %575 = vmatprep.subr.mxu0 0.0
        %576 = vmatpush1.msra.mxu0 0.0
        %577 = vmatprep.subr.mxu0 0.0
        %578 = vmatpush1.msra.mxu0 0.0
        %579 = vmatprep.subr.mxu0 0.0
        %580 = vmatpush1.msra.mxu0 0.0
        %581 = vmatprep.subr.mxu0 0.0
        %582 = vmatpush1.msra.mxu0 0.0
        %583 = vmatprep.subr.mxu0 0.0
        %584 = vmatpush1.msra.mxu0 0.0
        %585 = vmatprep.subr.mxu0 0.0
        %586 = vmatpush1.msra.mxu0 0.0
        %587 = vmatprep.subr.mxu0 0.0
        %588 = vmatpush1.msra.mxu0 0.0
        %589 = vmatprep.subr.mxu0 0.0
        %590 = vmatpush1.msra.mxu0 0.0
        %591 = vmatprep.subr.mxu0 0.0
        %592 = vmatpush1.msra.mxu0 0.0
        %593 = vmatprep.subr.mxu0 0.0
        %594 = vmatpush1.msra.mxu0 0.0
        %595 = vmatprep.subr.mxu0 0.0
        %596 = vmatpush1.msra.mxu0 0.0
        %597 = vmatprep.subr.mxu0 0.0
        %598 = vmatpush1.msra.mxu0 0.0
        %599 = vmatprep.subr.mxu0 0.0
        %600 = vmatpush1.msra.mxu0 0.0
        %601 = vmatprep.subr.mxu0 0.0
        %602 = vmatpush1.msra.mxu0 0.0
        %603 = vmatprep.mubr.f32.mxu0 0.0
        %604 = vmatmul.mubr.f32.gmra.mrb[0].mxu0 %v512
        %v605 = vpop.f32.mrb[0].mxu0
        %v606 = vadd.f32 0.0, %v605
        %v607 = vpop.f32.mrb[0].mxu0
        %v608 = vadd.f32 0.0, %v607
        %609 = vmatprep.mubr.f32.mxu0 0.0
        %610 = vmatmul.mubr.f32.gmra.mrb[0].mxu0 %v515
        %v611 = vpop.f32.mrb[0].mxu0
        %v612 = vadd.f32 0.0, %v611
        %v613 = vpop.f32.mrb[0].mxu0
        %v614 = vadd.f32 0.0, %v613
        %615 = vmatprep.mubr.f32.mxu0 0.0
        %616 = vmatmul.mubr.f32.gmra.mrb[0].mxu0 %v518
        %v617 = vpop.f32.mrb[0].mxu0
        %v618 = vadd.f32 0.0, %v617
        %v619 = vpop.f32.mrb[0].mxu0
        %v620 = vadd.f32 0.0, %v619
        %621 = vmatprep.mubr.f32.mxu0 0.0
        %622 = vmatmul.mubr.f32.gmra.mrb[0].mxu0 %v521
        %v623 = vpop.f32.mrb[0].mxu0
        %v624 = vadd.f32 0.0, %v623
        %v625 = vpop.f32.mrb[0].mxu0
        %v626 = vadd.f32 0.0, %v625
        %627 = vmatprep.mubr.f32.mxu0 0.0
        %628 = vmatmul.mubr.f32.gmra.mrb[0].mxu0 %v524
        %v629 = vpop.f32.mrb[0].mxu0
        %v630 = vadd.f32 0.0, %v629
        %v631 = vpop.f32.mrb[0].mxu0
        %v632 = vadd.f32 0.0, %v631
        %633 = vmatprep.mubr.f32.mxu0 0.0
        %634 = vmatmul.mubr.f32.gmra.mrb[0].mxu0 %v527
        %v635 = vpop.f32.mrb[0].mxu0
        %v636 = vadd.f32 0.0, %v635
        %v637 = vpop.f32.mrb[0].mxu0
        %v638 = vadd.f32 0.0, %v637
        %639 = vmatprep.mubr.f32.mxu0 0.0
        %640 = vmatmul.mubr.f32.gmra.mrb[0].mxu0 %v530
        %v641 = vpop.f32.mrb[0].mxu0
        %v642 = vadd.f32 0.0, %v641
        %v643 = vpop.f32.mrb[0].mxu0
        %v644 = vadd.f32 0.0, %v643
        %645 = vmatprep.mubr.f32.mxu0 0.0
        %646 = vmatmul.mubr.f32.gmra.mrb[0].mxu0 %v533
        %v647 = vpop.f32.mrb[0].mxu0
        %v648 = vadd.f32 0.0, %v647
        %v649 = vpop.f32.mrb[0].mxu0
        %v650 = vadd.f32 0.0, %v649
        %651 = vdwg.mxu0
        %v652 = vmax.f32 %v606, 0.0
        %v653 = vmax.f32 %v608, 0.0
        %v654 = vmax.f32 %v612, 0.0
        %v655 = vmax.f32 %v614, 0.0
        %v656 = vmax.f32 %v618, 0.0
        %v657 = vmax.f32 %v620, 0.0
        %v658 = vmax.f32 %v624, 0.0
        %v659 = vmax.f32 %v626, 0.0
        %v660 = vmax.f32 %v630, 0.0
        %v661 = vmax.f32 %v632, 0.0
        %v662 = vmax.f32 %v636, 0.0
        %v663 = vmax.f32 %v638, 0.0
        %v664 = vmax.f32 %v642, 0.0
        %v665 = vmax.f32 %v644, 0.0
        %v666 = vmax.f32 %v648, 0.0
        %v667 = vmax.f32 %v650, 0.0
        %668 = vst [vmem:[%s230] sm:$0xff] %v652
        %669 = vst [vmem:[%s230 + $0x8] sm:$0xff] %v653
        %670 = vst [vmem:[%s230 + $0x10] sm:$0xff] %v654
        %671 = vst [vmem:[%s230 + $0x18] sm:$0xff] %v655
        %672 = vst [vmem:[%s230 + $0x20] sm:$0xff] %v656
        %673 = vst [vmem:[%s230 + $0x28] sm:$0xff] %v657
        %674 = vst [vmem:[%s230 + $0x30] sm:$0xff] %v658
        %675 = vst [vmem:[%s230 + $0x38] sm:$0xff] %v659
        %676 = vst [vmem:[%s230 + $0x40] sm:$0xff] %v660
        %677 = vst [vmem:[%s230 + $0x48] sm:$0xff] %v661
        %678 = vst [vmem:[%s230 + $0x50] sm:$0xff] %v662
        %679 = vst [vmem:[%s230 + $0x58] sm:$0xff] %v663
        %680 = vst [vmem:[%s230 + $0x60] sm:$0xff] %v664
        %681 = vst [vmem:[%s230 + $0x68] sm:$0xff] %v665
        %682 = vst [vmem:[%s230 + $0x70] sm:$0xff] %v666
        %683 = vst [vmem:[%s230 + $0x78] sm:$0xff] %v667
        %s684 = sand.u32 %s119, 1
        %s685 = scalar_lea.sflag [#allocation4], %s684
        %s686 = sand.u32 %s119, 1
        %s687 = smul.addr %s686, 128
        %s688 = scalar_lea.vmem [#allocation7], %s687
        // Predicated region
        $region45: #{tpu_custom_call.1} parent=35 // pred_check
          %p689 = pneg %p129
        $region46: #{tpu_custom_call.1} parent=35 // pred_check_branch
          %691 = sbr.rel (%p689) target = $region48
        $region47: #{tpu_custom_call.1} parent=35 // pred_region
          %s693 = ssub.s32 2048, 2048
          %694 = vsyncadd %s685, %s693
          %s695 = smul.addr %s22, 16
          %s696 = smul.addr %s695, 128
          %s697 = scalar_lea.hbm %s4, %s696
          %s698 = sshll.u32 %s688, 4
          %s699 = int_to_ptr.vmem [resolvable:$true] %s698
          %704 = dma.vmem_to_hbm [thread:$0]  %s699, 2048, %s697, %s685, 256, 256, 16
        $region48: #{tpu_custom_call.1} parent=35 // pred_fallthru
          _
      $region36: #{tpu_custom_call.1} parent=5 // pred_fallthru
        _
      %p705 = scmp.le.s32.totalorder 2, %s17
      // Predicated region
      $region49: #{tpu_custom_call.1} parent=5 // pred_check
        %p706 = pneg %p705
      $region50: #{tpu_custom_call.1} parent=5 // pred_check_branch
        %708 = sbr.rel (%p706) target = $region52
      $region51: #{tpu_custom_call.1} parent=5 // pred_region
        %s709 = ssub.s32 %s17, 2
        // Predicated region
        $region53: #{tpu_custom_call.1} parent=51 // pred_check
          %p710 = pneg %p135
        $region54: #{tpu_custom_call.1} parent=51 // pred_check_branch
          %712 = sbr.rel (%p710) target = $region56
        $region55: #{tpu_custom_call.1} parent=51 // pred_region
          %s713 = sand.u32 %s120, 1
          %s714 = scalar_lea.sflag [#allocation4], %s713
          %s715 = sand.u32 %s120, 1
          %s716 = smul.addr %s715, 128
          %s717 = scalar_lea.vmem [#allocation7], %s716
          %718 = dma.done %s714, 2048
        $region56: #{tpu_custom_call.1} parent=51 // pred_fallthru
          _
      $region52: #{tpu_custom_call.1} parent=5 // pred_fallthru
        _
    $region6: #{tpu_custom_call.1} parent=1 // loop_footer
      %s21 = sadd.s32 1, %s17
    $region7: #{tpu_custom_call.1} parent=1 // loop_footer_branch
      %16 = sbr.rel target = $region3
    $region8: #{tpu_custom_call.1} parent=1 // loop_exit
      _
    %719 = vsyncpa [#allocation3], 1
    %s720 = scalar_lea.sflag [#allocation3], 1
    %721 = vsyncpa %s720, 1
    %722 = vsyncpa [#allocation6], 1
    %723 = vsyncpa [#allocation4], 1
    %s724 = scalar_lea.sflag [#allocation4], 1
    %725 = vsyncpa %s724, 1

</llo_original>
